<compile_context>
chip_gen: v6e
topology: v6e:2x2x1
jax: 0.10.0
libtpu: 0.0.40
codegen_flags: <defaults>
</compile_context>

<pallas_src>
import jax
import jax.numpy as jnp
from jax.experimental import pallas as pl
from jax.experimental.pallas import tpu as pltpu

IN_FEATURES = 128
OUT_FEATURES = 3


def _decoder_cols_kernel(x_ref, w_ref, b_ref, o_ref):
    # Column-tiled path (one N*M row per step, large T*V).
    # x_ref: (C, tile_c)  w_ref: (3, C)  b_ref: (3, 1)  o_ref: (3, tile_c)
    acc = jnp.dot(w_ref[...], x_ref[...], preferred_element_type=jnp.float32)
    o_ref[...] = (acc + b_ref[...]).astype(o_ref.dtype)


def _decoder_rows_kernel(x_ref, w_ref, b_ref, o_ref):
    # Row-batched path (several N*M rows per step, small T*V).
    # x_ref: (B, C, TV)  w_ref: (3, C)  b_ref: (3, 1)  o_ref: (B, 3, TV)
    B = x_ref.shape[0]
    w = jnp.broadcast_to(w_ref[...], (B,) + w_ref.shape)        # (B, 3, C), tiny
    acc = jnp.einsum("boc,bct->bot", w, x_ref[...],
                     preferred_element_type=jnp.float32)        # (B, 3, TV)
    o_ref[...] = (acc + b_ref[...][None, :, :]).astype(o_ref.dtype)


def decoder_forward(x, weight, bias, *,
                    target_block_bytes=4 * 1024 * 1024,
                    input_buffer_count=2,
                    vmem_limit_bytes=32 * 1024 * 1024,
                    out_dtype=None):
    """x: (N, M, 128, T, V); weight: (3, 128); bias: (3,) -> (N, 3, T, V, M).

    target_block_bytes : ~bytes of input DMA'd per grid step (perf review: ~4 MiB;
        double-buffered this stays well inside the 32 MiB scoped VMEM limit on
        every generation incl. v7x's 64 MiB physical VMEM).
    input_buffer_count : pipeline depth on the x input (sweep 3 per review;
        default 2 = standard double buffering).
    vmem_limit_bytes   : on v5e/v6e (128 MiB physical) this can be raised to
        48-64 MiB for bigger-tile experiments; keep <=48 MiB on v7x.
    """
    N, M, C, T, V = x.shape
    assert C == IN_FEATURES, f"channel dim must be {IN_FEATURES}, got {C}"
    NM, TV = N * M, T * V
    out_dtype = x.dtype if out_dtype is None else out_dtype

    # Free view (no HBM traffic): (N, M, C, T, V) -> (N*M, C, T*V).
    x3 = x.reshape(NM, C, TV)
    w = jnp.asarray(weight, x.dtype)                            # (3, 128)
    b = jnp.asarray(bias, x.dtype).reshape(OUT_FEATURES, 1)     # (3, 1)

    itemsize = jnp.dtype(x.dtype).itemsize
    out_itemsize = jnp.dtype(out_dtype).itemsize
    row_bytes = C * TV * itemsize           # bytes of one (C, T*V) slab

    cost = pl.CostEstimate(
        flops=2 * NM * TV * C * OUT_FEATURES,
        transcendentals=0,
        bytes_accessed=(itemsize * NM * TV * C
                        + out_itemsize * NM * TV * OUT_FEATURES
                        + itemsize * (C * OUT_FEATURES + OUT_FEATURES)),
    )

    x_spec_kw = {}
    if input_buffer_count != 2:
        # Sweep knob (compute per block is ~zero, loop is pure DMA throughput):
        # a 3rd in-flight input buffer can hide DMA issue/completion gaps.
        x_spec_kw["pipeline_mode"] = pl.Buffered(input_buffer_count)

    if row_bytes <= target_block_bytes:
        # ---- Row-batched path: amortize per-grid-step overhead over several
        # contiguous (C, T*V) slabs. Leading block dim is unconstrained; the
        # ragged trailing row-block is safe because every output row depends
        # only on its own input row (OOB input rows read padding, OOB output
        # rows are masked on writeback). NOTE: any future cross-row op inside
        # the kernel would have to mask those padded rows explicitly.
        b_rows = int(max(1, min(NM, target_block_bytes // row_bytes)))
        grid = (pl.cdiv(NM, b_rows),)
        out3 = pl.pallas_call(
            _decoder_rows_kernel,
            out_shape=jax.ShapeDtypeStruct((NM, OUT_FEATURES, TV), out_dtype),
            grid_spec=pltpu.PrefetchScalarGridSpec(
                num_scalar_prefetch=0,
                grid=grid,
                in_specs=[
                    pl.BlockSpec((b_rows, C, TV), lambda i: (i, 0, 0),
                                 **x_spec_kw),
                    pl.BlockSpec((OUT_FEATURES, C), lambda i: (0, 0)),
                    pl.BlockSpec((OUT_FEATURES, 1), lambda i: (0, 0)),
                ],
                out_specs=pl.BlockSpec((b_rows, OUT_FEATURES, TV),
                                       lambda i: (i, 0, 0)),
            ),
            compiler_params=pltpu.CompilerParams(
                dimension_semantics=("parallel",),
                vmem_limit_bytes=vmem_limit_bytes,
            ),
            cost_estimate=cost,
        )(x3, w, b)
    else:
        # ---- Column-tiled path: ~target_block_bytes (C, tile_c) input blocks,
        # lane-dense (3, tile_c) stores (tile_c multiple of 128), ragged
        # trailing column tile handled by masked writeback (each output column
        # depends only on its own input column).
        cols_budget = target_block_bytes // (C * itemsize)
        tile_c = int(max(128, (cols_budget // 128) * 128))
        tile_c = min(tile_c, TV) if TV % 128 == 0 else tile_c
        grid = (NM, pl.cdiv(TV, tile_c))
        out3 = pl.pallas_call(
            _decoder_cols_kernel,
            out_shape=jax.ShapeDtypeStruct((NM, OUT_FEATURES, TV), out_dtype),
            grid_spec=pltpu.PrefetchScalarGridSpec(
                num_scalar_prefetch=0,
                grid=grid,
                in_specs=[
                    # Leading batch dim squeezed out of the kernel view.
                    pl.BlockSpec((None, C, tile_c), lambda bi, j: (bi, 0, j),
                                 **x_spec_kw),
                    pl.BlockSpec((OUT_FEATURES, C), lambda bi, j: (0, 0)),
                    pl.BlockSpec((OUT_FEATURES, 1), lambda bi, j: (0, 0)),
                ],
                out_specs=pl.BlockSpec((None, OUT_FEATURES, tile_c),
                                       lambda bi, j: (bi, 0, j)),
            ),
            compiler_params=pltpu.CompilerParams(
                # Both grid axes independent -> megacore sharding on v7x.
                dimension_semantics=("parallel", "parallel"),
                vmem_limit_bytes=vmem_limit_bytes,
            ),
            cost_estimate=cost,
        )(x3, w, b)

    # Only the small (3-channel) output is rearranged in XLA (~3/128 of the
    # input traffic); writing the M-minor layout from the kernel would force
    # 1-2 lane wide masked stores and regress badly -- intentionally avoided.
    out = out3.reshape(N, M, OUT_FEATURES, T, V)
    out = jnp.transpose(out, (0, 2, 3, 4, 1))
    return out


def _reference_forward(x, weight, bias):
    # Pure-JAX reference mirroring the torch code (computed in f32).
    xp = jnp.transpose(x, (0, 1, 3, 4, 2)).astype(jnp.float32)   # (N,M,T,V,128)
    y = jnp.einsum("nmtvc,oc->nmtvo", xp, weight.astype(jnp.float32))
    y = y + bias.astype(jnp.float32)
    return jnp.transpose(y, (0, 4, 2, 3, 1))                     # (N,3,T,V,M)


if __name__ == "__main__":
    key = jax.random.PRNGKey(0)
    k_x, k_w, k_b, k_x2 = jax.random.split(key, 4)

    # Deterministic Linear(128, 3) params (uniform like torch default bound).
    bound = 1.0 / (IN_FEATURES ** 0.5)
    weight = jax.random.uniform(k_w, (OUT_FEATURES, IN_FEATURES),
                                minval=-bound, maxval=bound, dtype=jnp.float32)
    bias = jax.random.uniform(k_b, (OUT_FEATURES,),
                              minval=-bound, maxval=bound, dtype=jnp.float32)

    # 1) Default config: small T*V -> row-batched path, single block.
    N, M, C, T, V = 2, 2, 128, 4, 8
    x = jax.random.normal(k_x, (N, M, C, T, V), dtype=jnp.float32)
    out = jax.block_until_ready(decoder_forward(x, weight, bias))
    ref = _reference_forward(x, weight, bias)
    assert out.shape == (N, OUT_FEATURES, T, V, M), out.shape
    assert jnp.allclose(out, ref, atol=1e-4, rtol=1e-4)

    # 2) Row-batched path with a ragged trailing row-block (NM=4, b_rows=3).
    small_budget = 3 * C * (T * V) * 4
    out2 = jax.block_until_ready(
        decoder_forward(x, weight, bias, target_block_bytes=small_budget))
    assert jnp.allclose(out2, ref, atol=1e-4, rtol=1e-4)

    # 3) Column-tiled path with a ragged trailing column tile
    #    (TV=150, tile_c=128) forced via a tiny block budget.
    T2, V2 = 5, 30
    x2 = jax.random.normal(k_x2, (N, M, C, T2, V2), dtype=jnp.float32)
    out3 = jax.block_until_ready(
        decoder_forward(x2, weight, bias, target_block_bytes=128 * C * 4))
    ref2 = _reference_forward(x2, weight, bias)
    assert out3.shape == (N, OUT_FEATURES, T2, V2, M), out3.shape
    assert jnp.allclose(out3, ref2, atol=1e-4, rtol=1e-4)

    # 4) bf16 inputs (halves HBM traffic; f32 MXU accumulation in-kernel).
    out_bf16 = jax.block_until_ready(
        decoder_forward(x.astype(jnp.bfloat16), weight.astype(jnp.bfloat16),
                        bias.astype(jnp.bfloat16)))
    assert jnp.allclose(out_bf16.astype(jnp.float32), ref,
                        atol=5e-2, rtol=5e-2)

    print("KERNEL_OK")
</pallas_src>

<mosaic_0001>
module attributes {stable_mosaic.version = 11 : i64} {
  func.func @_decoder_rows_kernel(%arg0: i32, %arg1: memref<4x128x32xf32, #tpu.memory_space<vmem>>, %arg2: memref<3x128xf32, #tpu.memory_space<vmem>>, %arg3: memref<3x1xf32, #tpu.memory_space<vmem>>, %arg4: memref<4x3x32xf32, #tpu.memory_space<vmem>>) attributes {dimension_semantics = [#tpu.dimension_semantics<parallel>], iteration_bounds = array<i64: 1>, scalar_prefetch = 0 : i64, scratch_operands = 0 : i64, tpu.core_type = #tpu.core_type<tc>, window_params = [{transform_indices = @transform_0, window_bounds = array<i64: 4, 128, 32>}, {pipeline_mode = #tpu.pipeline_mode<synchronous>, transform_indices = @transform_1, window_bounds = array<i64: 3, 128>}, {pipeline_mode = #tpu.pipeline_mode<synchronous>, transform_indices = @transform_2, window_bounds = array<i64: 3, 1>}, {transform_indices = @transform_3, window_bounds = array<i64: 4, 3, 32>}]} {
    %c0 = arith.constant 0 : index
    %c0_0 = arith.constant 0 : index
    %0 = vector.load %arg2[%c0, %c0_0] : memref<3x128xf32, #tpu.memory_space<vmem>>, vector<3x128xf32>
    %1 = vector.shape_cast %0 : vector<3x128xf32> to vector<1x3x128xf32>
    %2 = vector.broadcast %1 : vector<1x3x128xf32> to vector<4x3x128xf32>
    %c0_1 = arith.constant 0 : index
    %c0_2 = arith.constant 0 : index
    %c0_3 = arith.constant 0 : index
    %3 = vector.load %arg1[%c0_1, %c0_2, %c0_3] : memref<4x128x32xf32, #tpu.memory_space<vmem>>, vector<4x128x32xf32>
    "tpu.trace_start"() <{level = 10 : i32, message = "boc,bct->bot"}> : () -> ()
    %cst = arith.constant dense<0.000000e+00> : vector<4x3x32xf32>
    %4 = tpu.matmul %2, %3, %cst {dimension_numbers = #tpu.dot_dimension_numbers<[2], [1], [1], [2], [0, 0, 0, 1, 1, 2], [0], [0]>} : vector<4x3x128xf32>, vector<4x128x32xf32>, vector<4x3x32xf32> -> vector<4x3x32xf32>
    "tpu.trace_stop"() : () -> ()
    %c0_4 = arith.constant 0 : index
    %c0_5 = arith.constant 0 : index
    %5 = vector.load %arg3[%c0_4, %c0_5] : memref<3x1xf32, #tpu.memory_space<vmem>>, vector<3x1xf32>
    %6 = vector.shape_cast %5 : vector<3x1xf32> to vector<1x3x1xf32>
    %7 = vector.broadcast %6 : vector<1x3x1xf32> to vector<4x3x32xf32>
    %8 = arith.addf %4, %7 : vector<4x3x32xf32>
    %c0_6 = arith.constant 0 : index
    %c0_7 = arith.constant 0 : index
    %c0_8 = arith.constant 0 : index
    %9 = vector.load %arg4[%c0_6, %c0_7, %c0_8] : memref<4x3x32xf32, #tpu.memory_space<vmem>>, vector<4x3x32xf32>
    tpu.vector_store %arg4[%c0_6, %c0_7, %c0_8], %8 {strides = array<i32>} : memref<4x3x32xf32, #tpu.memory_space<vmem>>, vector<4x3x32xf32>,
    return
  }
  func.func @transform_0(%arg0: i32) -> (i32, i32, i32) {
    %c0_i32 = arith.constant 0 : i32
    %c0_i32_0 = arith.constant 0 : i32
    %c0_i32_1 = arith.constant 0 : i32
    return %arg0, %c0_i32, %c0_i32_0 : i32, i32, i32
  }
  func.func @transform_1(%arg0: i32) -> (i32, i32) {
    %c0_i32 = arith.constant 0 : i32
    %c0_i32_0 = arith.constant 0 : i32
    %c0_i32_1 = arith.constant 0 : i32
    return %c0_i32, %c0_i32_0 : i32, i32
  }
  func.func @transform_2(%arg0: i32) -> (i32, i32) {
    %c0_i32 = arith.constant 0 : i32
    %c0_i32_0 = arith.constant 0 : i32
    %c0_i32_1 = arith.constant 0 : i32
    return %c0_i32, %c0_i32_0 : i32, i32
  }
  func.func @transform_3(%arg0: i32) -> (i32, i32, i32) {
    %c0_i32 = arith.constant 0 : i32
    %c0_i32_0 = arith.constant 0 : i32
    %c0_i32_1 = arith.constant 0 : i32
    return %arg0, %c0_i32, %c0_i32_0 : i32, i32, i32
  }
}

</mosaic_0001>

<llo_original>
// kernel: tpu_custom_call.1
$region0: #{tpu_custom_call.1}
  #allocation0 [shape = 'u32[]', space=smem, size = 0x4, offset = 0x4, fixed_abs, tag = 'smem constant byte address 0x4 - core index']
  #allocation1 [shape = 'u32[144,128]{1,0:T(1,128)}', space=vmem, size = 0x12000, scoped, tag = 'internal scratch']
  %s0 = inlined_call_operand.vmem [shape: f32[4,128,32], index: 0, kind: input, shape index: {}]
  %s1 = inlined_call_operand.vmem [shape: f32[3,128], index: 1, kind: input, shape index: {}]
  %s2 = inlined_call_operand.vmem [shape: f32[3,1], index: 2, kind: input, shape index: {}]
  %s3 = inlined_call_operand.vmem [shape: f32[4,3,32], index: 3, kind: output, shape index: {}]
  %s4 = sld [smem:[#allocation0]]
  $region22: #{tpu_custom_call.1} parent=0
    _
  %s6 = ssub.s32 1, %s4
  %s7 = scalar_select 0, %s6, %s4
  // Predicated region
  $region2: #{tpu_custom_call.1} parent=0 // pred_check
    _
  $region3: #{tpu_custom_call.1} parent=0 // pred_check_branch
    %9 = sbr.rel (0) target = $region5
  $region4: #{tpu_custom_call.1} parent=0 // pred_region
    _
  $region5: #{tpu_custom_call.1} parent=0 // pred_fallthru
    _
  // Predicated region
  $region6: #{tpu_custom_call.1} parent=0 // pred_check
    _
  $region7: #{tpu_custom_call.1} parent=0 // pred_check_branch
    %11 = sbr.rel (0) target = $region9
  $region8: #{tpu_custom_call.1} parent=0 // pred_region
    _
  $region9: #{tpu_custom_call.1} parent=0 // pred_fallthru
    _
  // Predicated region
  $region10: #{tpu_custom_call.1} parent=0 // pred_check
    _
  $region11: #{tpu_custom_call.1} parent=0 // pred_check_branch
    %13 = sbr.rel (0) target = $region13
  $region12: #{tpu_custom_call.1} parent=0 // pred_region
    _
  $region13: #{tpu_custom_call.1} parent=0 // pred_fallthru
    _
  %v14 = vld [vmem:[%s1] sm:$0x7]
  %v15 = vld [vmem:[%s0] sm:$0xff]
  %v16 = vld [vmem:[%s0 + $0x8] sm:$0xff]
  %v17 = vld [vmem:[%s0 + $0x10] sm:$0xff]
  %v18 = vld [vmem:[%s0 + $0x18] sm:$0xff]
  %v19 = vld [vmem:[%s0 + $0x20] sm:$0xff]
  %v20 = vld [vmem:[%s0 + $0x28] sm:$0xff]
  %v21 = vld [vmem:[%s0 + $0x30] sm:$0xff]
  %v22 = vld [vmem:[%s0 + $0x38] sm:$0xff]
  %v23 = vld [vmem:[%s0 + $0x40] sm:$0xff]
  %v24 = vld [vmem:[%s0 + $0x48] sm:$0xff]
  %v25 = vld [vmem:[%s0 + $0x50] sm:$0xff]
  %v26 = vld [vmem:[%s0 + $0x58] sm:$0xff]
  %v27 = vld [vmem:[%s0 + $0x60] sm:$0xff]
  %v28 = vld [vmem:[%s0 + $0x68] sm:$0xff]
  %v29 = vld [vmem:[%s0 + $0x70] sm:$0xff]
  %v30 = vld [vmem:[%s0 + $0x78] sm:$0xff]
  %v31 = vld [vmem:[%s0 + $0x80] sm:$0xff]
  %v32 = vld [vmem:[%s0 + $0x88] sm:$0xff]
  %v33 = vld [vmem:[%s0 + $0x90] sm:$0xff]
  %v34 = vld [vmem:[%s0 + $0x98] sm:$0xff]
  %v35 = vld [vmem:[%s0 + $0xa0] sm:$0xff]
  %v36 = vld [vmem:[%s0 + $0xa8] sm:$0xff]
  %v37 = vld [vmem:[%s0 + $0xb0] sm:$0xff]
  %v38 = vld [vmem:[%s0 + $0xb8] sm:$0xff]
  %v39 = vld [vmem:[%s0 + $0xc0] sm:$0xff]
  %v40 = vld [vmem:[%s0 + $0xc8] sm:$0xff]
  %v41 = vld [vmem:[%s0 + $0xd0] sm:$0xff]
  %v42 = vld [vmem:[%s0 + $0xd8] sm:$0xff]
  %v43 = vld [vmem:[%s0 + $0xe0] sm:$0xff]
  %v44 = vld [vmem:[%s0 + $0xe8] sm:$0xff]
  %v45 = vld [vmem:[%s0 + $0xf0] sm:$0xff]
  %v46 = vld [vmem:[%s0 + $0xf8] sm:$0xff]
  %v47 = vld [vmem:[%s0 + $0x100] sm:$0xff]
  %v48 = vld [vmem:[%s0 + $0x108] sm:$0xff]
  %v49 = vld [vmem:[%s0 + $0x110] sm:$0xff]
  %v50 = vld [vmem:[%s0 + $0x118] sm:$0xff]
  %v51 = vld [vmem:[%s0 + $0x120] sm:$0xff]
  %v52 = vld [vmem:[%s0 + $0x128] sm:$0xff]
  %v53 = vld [vmem:[%s0 + $0x130] sm:$0xff]
  %v54 = vld [vmem:[%s0 + $0x138] sm:$0xff]
  %v55 = vld [vmem:[%s0 + $0x140] sm:$0xff]
  %v56 = vld [vmem:[%s0 + $0x148] sm:$0xff]
  %v57 = vld [vmem:[%s0 + $0x150] sm:$0xff]
  %v58 = vld [vmem:[%s0 + $0x158] sm:$0xff]
  %v59 = vld [vmem:[%s0 + $0x160] sm:$0xff]
  %v60 = vld [vmem:[%s0 + $0x168] sm:$0xff]
  %v61 = vld [vmem:[%s0 + $0x170] sm:$0xff]
  %v62 = vld [vmem:[%s0 + $0x178] sm:$0xff]
  %v63 = vld [vmem:[%s0 + $0x180] sm:$0xff]
  %v64 = vld [vmem:[%s0 + $0x188] sm:$0xff]
  %v65 = vld [vmem:[%s0 + $0x190] sm:$0xff]
  %v66 = vld [vmem:[%s0 + $0x198] sm:$0xff]
  %v67 = vld [vmem:[%s0 + $0x1a0] sm:$0xff]
  %v68 = vld [vmem:[%s0 + $0x1a8] sm:$0xff]
  %v69 = vld [vmem:[%s0 + $0x1b0] sm:$0xff]
  %v70 = vld [vmem:[%s0 + $0x1b8] sm:$0xff]
  %v71 = vld [vmem:[%s0 + $0x1c0] sm:$0xff]
  %v72 = vld [vmem:[%s0 + $0x1c8] sm:$0xff]
  %v73 = vld [vmem:[%s0 + $0x1d0] sm:$0xff]
  %v74 = vld [vmem:[%s0 + $0x1d8] sm:$0xff]
  %v75 = vld [vmem:[%s0 + $0x1e0] sm:$0xff]
  %v76 = vld [vmem:[%s0 + $0x1e8] sm:$0xff]
  %v77 = vld [vmem:[%s0 + $0x1f0] sm:$0xff]
  %v78 = vld [vmem:[%s0 + $0x1f8] sm:$0xff]
  %v79 = vld [vmem:[%s2] sm:$0x7]
  %81 = vset.pattern.permute.xlu0 0
  %82 = vperm.xlu0 %81, %v79
  %v83 = vpop.permute.xlu0 %82
  %85 = vmatprep.subr.mxu0 0.0
  %86 = vmatpush1.msra.mxu0 %v30
  %87 = vmatprep.subr.mxu0 0.0
  %88 = vmatpush1.msra.mxu0 %v29
  %89 = vmatprep.subr.mxu0 0.0
  %90 = vmatpush1.msra.mxu0 %v28
  %91 = vmatprep.subr.mxu0 0.0
  %92 = vmatpush1.msra.mxu0 %v27
  %93 = vmatprep.subr.mxu0 0.0
  %94 = vmatpush1.msra.mxu0 %v26
  %95 = vmatprep.subr.mxu0 0.0
  %96 = vmatpush1.msra.mxu0 %v25
  %97 = vmatprep.subr.mxu0 0.0
  %98 = vmatpush1.msra.mxu0 %v24
  %99 = vmatprep.subr.mxu0 0.0
  %100 = vmatpush1.msra.mxu0 %v23
  %101 = vmatprep.subr.mxu0 0.0
  %102 = vmatpush1.msra.mxu0 %v22
  %103 = vmatprep.subr.mxu0 0.0
  %104 = vmatpush1.msra.mxu0 %v21
  %105 = vmatprep.subr.mxu0 0.0
  %106 = vmatpush1.msra.mxu0 %v20
  %107 = vmatprep.subr.mxu0 0.0
  %108 = vmatpush1.msra.mxu0 %v19
  %109 = vmatprep.subr.mxu0 0.0
  %110 = vmatpush1.msra.mxu0 %v18
  %111 = vmatprep.subr.mxu0 0.0
  %112 = vmatpush1.msra.mxu0 %v17
  %113 = vmatprep.subr.mxu0 0.0
  %114 = vmatpush1.msra.mxu0 %v16
  %115 = vmatprep.subr.mxu0 0.0
  %116 = vmatpush1.msra.mxu0 %v15
  %117 = vmatprep.subr.mxu0 0.0
  %118 = vmatpush2.msra.mxu0 0.0
  %119 = vmatprep.subr.mxu0 0.0
  %120 = vmatpush2.msra.mxu0 0.0
  %121 = vmatprep.subr.mxu0 0.0
  %122 = vmatpush2.msra.mxu0 0.0
  %123 = vmatprep.subr.mxu0 0.0
  %124 = vmatpush2.msra.mxu0 0.0
  %125 = vmatprep.subr.mxu0 0.0
  %126 = vmatpush2.msra.mxu0 0.0
  %127 = vmatprep.subr.mxu0 0.0
  %128 = vmatpush2.msra.mxu0 0.0
  %129 = vmatprep.subr.mxu0 0.0
  %130 = vmatpush2.msra.mxu0 0.0
  %131 = vmatprep.subr.mxu0 0.0
  %132 = vmatpush2.msra.mxu0 0.0
  %133 = vmatprep.subr.mxu0 0.0
  %134 = vmatpush2.msra.mxu0 0.0
  %135 = vmatprep.subr.mxu0 0.0
  %136 = vmatpush2.msra.mxu0 0.0
  %137 = vmatprep.subr.mxu0 0.0
  %138 = vmatpush2.msra.mxu0 0.0
  %139 = vmatprep.subr.mxu0 0.0
  %140 = vmatpush2.msra.mxu0 0.0
  %141 = vmatprep.subr.mxu0 0.0
  %142 = vmatpush2.msra.mxu0 0.0
  %143 = vmatprep.subr.mxu0 0.0
  %144 = vmatpush2.msra.mxu0 0.0
  %145 = vmatprep.subr.mxu0 0.0
  %146 = vmatpush2.msra.mxu0 0.0
  %147 = vmatprep.subr.mxu0 0.0
  %148 = vmatpush2.msra.mxu0 0.0
  %149 = vmatprep.mubr.f32.mxu0 0.0
  %150 = vmatmul.mubr.f32.gmra.mxu0 %v14
  %v151 = vpop.f32.mrf.mxu0
  %v152 = vadd.f32 %v83, %v151
  %v153 = vpop.f32.mrf.mxu0
  %154 = vdwg.mxu0
  %155 = vmatprep.subr.mxu0 0.0
  %156 = vmatpush1.msra.mxu0 %v46
  %157 = vmatprep.subr.mxu0 0.0
  %158 = vmatpush1.msra.mxu0 %v45
  %159 = vmatprep.subr.mxu0 0.0
  %160 = vmatpush1.msra.mxu0 %v44
  %161 = vmatprep.subr.mxu0 0.0
  %162 = vmatpush1.msra.mxu0 %v43
  %163 = vmatprep.subr.mxu0 0.0
  %164 = vmatpush1.msra.mxu0 %v42
  %165 = vmatprep.subr.mxu0 0.0
  %166 = vmatpush1.msra.mxu0 %v41
  %167 = vmatprep.subr.mxu0 0.0
  %168 = vmatpush1.msra.mxu0 %v40
  %169 = vmatprep.subr.mxu0 0.0
  %170 = vmatpush1.msra.mxu0 %v39
  %171 = vmatprep.subr.mxu0 0.0
  %172 = vmatpush1.msra.mxu0 %v38
  %173 = vmatprep.subr.mxu0 0.0
  %174 = vmatpush1.msra.mxu0 %v37
  %175 = vmatprep.subr.mxu0 0.0
  %176 = vmatpush1.msra.mxu0 %v36
  %177 = vmatprep.subr.mxu0 0.0
  %178 = vmatpush1.msra.mxu0 %v35
  %179 = vmatprep.subr.mxu0 0.0
  %180 = vmatpush1.msra.mxu0 %v34
  %181 = vmatprep.subr.mxu0 0.0
  %182 = vmatpush1.msra.mxu0 %v33
  %183 = vmatprep.subr.mxu0 0.0
  %184 = vmatpush1.msra.mxu0 %v32
  %185 = vmatprep.subr.mxu0 0.0
  %186 = vmatpush1.msra.mxu0 %v31
  %187 = vmatprep.subr.mxu0 0.0
  %188 = vmatpush2.msra.mxu0 0.0
  %189 = vmatprep.subr.mxu0 0.0
  %190 = vmatpush2.msra.mxu0 0.0
  %191 = vmatprep.subr.mxu0 0.0
  %192 = vmatpush2.msra.mxu0 0.0
  %193 = vmatprep.subr.mxu0 0.0
  %194 = vmatpush2.msra.mxu0 0.0
  %195 = vmatprep.subr.mxu0 0.0
  %196 = vmatpush2.msra.mxu0 0.0
  %197 = vmatprep.subr.mxu0 0.0
  %198 = vmatpush2.msra.mxu0 0.0
  %199 = vmatprep.subr.mxu0 0.0
  %200 = vmatpush2.msra.mxu0 0.0
  %201 = vmatprep.subr.mxu0 0.0
  %202 = vmatpush2.msra.mxu0 0.0
  %203 = vmatprep.subr.mxu0 0.0
  %204 = vmatpush2.msra.mxu0 0.0
  %205 = vmatprep.subr.mxu0 0.0
  %206 = vmatpush2.msra.mxu0 0.0
  %207 = vmatprep.subr.mxu0 0.0
  %208 = vmatpush2.msra.mxu0 0.0
  %209 = vmatprep.subr.mxu0 0.0
  %210 = vmatpush2.msra.mxu0 0.0
  %211 = vmatprep.subr.mxu0 0.0
  %212 = vmatpush2.msra.mxu0 0.0
  %213 = vmatprep.subr.mxu0 0.0
  %214 = vmatpush2.msra.mxu0 0.0
  %215 = vmatprep.subr.mxu0 0.0
  %216 = vmatpush2.msra.mxu0 0.0
  %217 = vmatprep.subr.mxu0 0.0
  %218 = vmatpush2.msra.mxu0 0.0
  %219 = vmatprep.mubr.f32.mxu0 0.0
  %220 = vmatmul.mubr.f32.gmra.mxu0 %v14
  %v221 = vpop.f32.mrf.mxu0
  %v222 = vadd.f32 %v83, %v221
  %v223 = vpop.f32.mrf.mxu0
  %224 = vdwg.mxu0
  %225 = vmatprep.subr.mxu0 0.0
  %226 = vmatpush1.msra.mxu0 %v62
  %227 = vmatprep.subr.mxu0 0.0
  %228 = vmatpush1.msra.mxu0 %v61
  %229 = vmatprep.subr.mxu0 0.0
  %230 = vmatpush1.msra.mxu0 %v60
  %231 = vmatprep.subr.mxu0 0.0
  %232 = vmatpush1.msra.mxu0 %v59
  %233 = vmatprep.subr.mxu0 0.0
  %234 = vmatpush1.msra.mxu0 %v58
  %235 = vmatprep.subr.mxu0 0.0
  %236 = vmatpush1.msra.mxu0 %v57
  %237 = vmatprep.subr.mxu0 0.0
  %238 = vmatpush1.msra.mxu0 %v56
  %239 = vmatprep.subr.mxu0 0.0
  %240 = vmatpush1.msra.mxu0 %v55
  %241 = vmatprep.subr.mxu0 0.0
  %242 = vmatpush1.msra.mxu0 %v54
  %243 = vmatprep.subr.mxu0 0.0
  %244 = vmatpush1.msra.mxu0 %v53
  %245 = vmatprep.subr.mxu0 0.0
  %246 = vmatpush1.msra.mxu0 %v52
  %247 = vmatprep.subr.mxu0 0.0
  %248 = vmatpush1.msra.mxu0 %v51
  %249 = vmatprep.subr.mxu0 0.0
  %250 = vmatpush1.msra.mxu0 %v50
  %251 = vmatprep.subr.mxu0 0.0
  %252 = vmatpush1.msra.mxu0 %v49
  %253 = vmatprep.subr.mxu0 0.0
  %254 = vmatpush1.msra.mxu0 %v48
  %255 = vmatprep.subr.mxu0 0.0
  %256 = vmatpush1.msra.mxu0 %v47
  %257 = vmatprep.subr.mxu0 0.0
  %258 = vmatpush2.msra.mxu0 0.0
  %259 = vmatprep.subr.mxu0 0.0
  %260 = vmatpush2.msra.mxu0 0.0
  %261 = vmatprep.subr.mxu0 0.0
  %262 = vmatpush2.msra.mxu0 0.0
  %263 = vmatprep.subr.mxu0 0.0
  %264 = vmatpush2.msra.mxu0 0.0
  %265 = vmatprep.subr.mxu0 0.0
  %266 = vmatpush2.msra.mxu0 0.0
  %267 = vmatprep.subr.mxu0 0.0
  %268 = vmatpush2.msra.mxu0 0.0
  %269 = vmatprep.subr.mxu0 0.0
  %270 = vmatpush2.msra.mxu0 0.0
  %271 = vmatprep.subr.mxu0 0.0
  %272 = vmatpush2.msra.mxu0 0.0
  %273 = vmatprep.subr.mxu0 0.0
  %274 = vmatpush2.msra.mxu0 0.0
  %275 = vmatprep.subr.mxu0 0.0
  %276 = vmatpush2.msra.mxu0 0.0
  %277 = vmatprep.subr.mxu0 0.0
  %278 = vmatpush2.msra.mxu0 0.0
  %279 = vmatprep.subr.mxu0 0.0
  %280 = vmatpush2.msra.mxu0 0.0
  %281 = vmatprep.subr.mxu0 0.0
  %282 = vmatpush2.msra.mxu0 0.0
  %283 = vmatprep.subr.mxu0 0.0
  %284 = vmatpush2.msra.mxu0 0.0
  %285 = vmatprep.subr.mxu0 0.0
  %286 = vmatpush2.msra.mxu0 0.0
  %287 = vmatprep.subr.mxu0 0.0
  %288 = vmatpush2.msra.mxu0 0.0
  %289 = vmatprep.mubr.f32.mxu0 0.0
  %290 = vmatmul.mubr.f32.gmra.mxu0 %v14
  %v291 = vpop.f32.mrf.mxu0
  %v292 = vadd.f32 %v83, %v291
  %v293 = vpop.f32.mrf.mxu0
  %294 = vdwg.mxu0
  %295 = vmatprep.subr.mxu0 0.0
  %296 = vmatpush1.msra.mxu0 %v78
  %297 = vmatprep.subr.mxu0 0.0
  %298 = vmatpush1.msra.mxu0 %v77
  %299 = vmatprep.subr.mxu0 0.0
  %300 = vmatpush1.msra.mxu0 %v76
  %301 = vmatprep.subr.mxu0 0.0
  %302 = vmatpush1.msra.mxu0 %v75
  %303 = vmatprep.subr.mxu0 0.0
  %304 = vmatpush1.msra.mxu0 %v74
  %305 = vmatprep.subr.mxu0 0.0
  %306 = vmatpush1.msra.mxu0 %v73
  %307 = vmatprep.subr.mxu0 0.0
  %308 = vmatpush1.msra.mxu0 %v72
  %309 = vmatprep.subr.mxu0 0.0
  %310 = vmatpush1.msra.mxu0 %v71
  %311 = vmatprep.subr.mxu0 0.0
  %312 = vmatpush1.msra.mxu0 %v70
  %313 = vmatprep.subr.mxu0 0.0
  %314 = vmatpush1.msra.mxu0 %v69
  %315 = vmatprep.subr.mxu0 0.0
  %316 = vmatpush1.msra.mxu0 %v68
  %317 = vmatprep.subr.mxu0 0.0
  %318 = vmatpush1.msra.mxu0 %v67
  %319 = vmatprep.subr.mxu0 0.0
  %320 = vmatpush1.msra.mxu0 %v66
  %321 = vmatprep.subr.mxu0 0.0
  %322 = vmatpush1.msra.mxu0 %v65
  %323 = vmatprep.subr.mxu0 0.0
  %324 = vmatpush1.msra.mxu0 %v64
  %325 = vmatprep.subr.mxu0 0.0
  %326 = vmatpush1.msra.mxu0 %v63
  %327 = vmatprep.subr.mxu0 0.0
  %328 = vmatpush2.msra.mxu0 0.0
  %329 = vmatprep.subr.mxu0 0.0
  %330 = vmatpush2.msra.mxu0 0.0
  %331 = vmatprep.subr.mxu0 0.0
  %332 = vmatpush2.msra.mxu0 0.0
  %333 = vmatprep.subr.mxu0 0.0
  %334 = vmatpush2.msra.mxu0 0.0
  %335 = vmatprep.subr.mxu0 0.0
  %336 = vmatpush2.msra.mxu0 0.0
  %337 = vmatprep.subr.mxu0 0.0
  %338 = vmatpush2.msra.mxu0 0.0
  %339 = vmatprep.subr.mxu0 0.0
  %340 = vmatpush2.msra.mxu0 0.0
  %341 = vmatprep.subr.mxu0 0.0
  %342 = vmatpush2.msra.mxu0 0.0
  %343 = vmatprep.subr.mxu0 0.0
  %344 = vmatpush2.msra.mxu0 0.0
  %345 = vmatprep.subr.mxu0 0.0
  %346 = vmatpush2.msra.mxu0 0.0
  %347 = vmatprep.subr.mxu0 0.0
  %348 = vmatpush2.msra.mxu0 0.0
  %349 = vmatprep.subr.mxu0 0.0
  %350 = vmatpush2.msra.mxu0 0.0
  %351 = vmatprep.subr.mxu0 0.0
  %352 = vmatpush2.msra.mxu0 0.0
  %353 = vmatprep.subr.mxu0 0.0
  %354 = vmatpush2.msra.mxu0 0.0
  %355 = vmatprep.subr.mxu0 0.0
  %356 = vmatpush2.msra.mxu0 0.0
  %357 = vmatprep.subr.mxu0 0.0
  %358 = vmatpush2.msra.mxu0 0.0
  %359 = vmatprep.mubr.f32.mxu0 0.0
  %360 = vmatmul.mubr.f32.gmra.mxu0 %v14
  %v361 = vpop.f32.mrf.mxu0
  %v362 = vadd.f32 %v83, %v361
  %v363 = vpop.f32.mrf.mxu0
  %364 = vdwg.mxu0
  %vm365 = vcmask 256000
  %366 = vst.msk [vmem:[%s3] sm:$0x7] %vm365, %v152
  %367 = vst.msk [vmem:[%s3 + $0x4] sm:$0x7] %vm365, %v222
  %368 = vst.msk [vmem:[%s3 + $0x8] sm:$0x7] %vm365, %v292
  %369 = vst.msk [vmem:[%s3 + $0xc] sm:$0x7] %vm365, %v362
  // Predicated region
  $region14: #{tpu_custom_call.1} parent=0 // pred_check
    _
  $region15: #{tpu_custom_call.1} parent=0 // pred_check_branch
    %371 = sbr.rel (0) target = $region17
  $region16: #{tpu_custom_call.1} parent=0 // pred_region
    _
  $region17: #{tpu_custom_call.1} parent=0 // pred_fallthru
    _
  // Predicated region
  $region18: #{tpu_custom_call.1} parent=0 // pred_check
    _
  $region19: #{tpu_custom_call.1} parent=0 // pred_check_branch
    %373 = sbr.rel (0) target = $region21
  $region20: #{tpu_custom_call.1} parent=0 // pred_region
    _
  $region21: #{tpu_custom_call.1} parent=0 // pred_fallthru
    _

</llo_original>
